<compile_context>
chip_gen: v6e
topology: v6e:2x2x1
jax: 0.10.0
libtpu: 0.0.40
codegen_flags: <defaults>
</compile_context>

<pallas_src>
import functools

import jax
import jax.numpy as jnp
from jax.experimental import pallas as pl
from jax.experimental.pallas import tpu as pltpu

# Hyper-parameters (deterministic, in-script; would come from `config` in PyTorch).
FOCAL_ALPHA = 0.25
FOCAL_GAMMA = 2.0
LABEL_SMOOTHING = 0.1
CLASS_WEIGHTS = (0.35, 2.85)   # [w_class0, w_class1], as in the PyTorch buffer

LANES = 128
R_TILE_MAX = 512               # rows of 128 examples per grid step (64K examples)


def _round_up(x, m):
    return ((x + m - 1) // m) * m


def _int_pow(x, gamma):
    """x**gamma with non-negative integer gamma unrolled to VPU multiplies."""
    g = float(gamma)
    if g == int(g) and int(g) >= 0:
        gi = int(g)
        if gi == 0:
            return jnp.ones_like(x)
        r = x
        for _ in range(gi - 1):
            r = r * x
        return r
    return jnp.power(x, gamma)


def _loss_kernel(logits_ref, labels_ref, out_ref, *,
                 n_valid, r_tile, focal_alpha, focal_gamma,
                 label_smoothing, w0, w1):
    pid = pl.program_id(0)

    l0 = logits_ref[0].astype(jnp.float32)          # (r_tile, 128) class-0 logits
    l1 = logits_ref[1].astype(jnp.float32)          # (r_tile, 128) class-1 logits
    labels = labels_ref[...]                        # (r_tile, 128) int32

    # Binary log-sum-exp via softplus identity: one exp + one log (not two exps).
    # (jnp.log(1+x) instead of log1p: guaranteed Mosaic lowering, same EUP count.)
    diff = jnp.abs(l0 - l1)
    lse = jnp.maximum(l0, l1) + jnp.log(1.0 + jnp.exp(-diff))

    is_one = labels == 1
    logit_y = jnp.where(is_one, l1, l0)                         # logit of the true class
    w_y = jnp.where(is_one, jnp.float32(w1), jnp.float32(w0))   # class weight

    nll = lse - logit_y                                         # unweighted NLL
    ce = w_y * nll                                              # weighted CE (reduction='none')
    pt = jnp.exp(-ce)
    focal_i = focal_alpha * _int_pow(1.0 - pt, focal_gamma) * ce

    smooth_i = lse - 0.5 * (l0 + l1)                            # -mean_c log_softmax(logits)_c
    ls_i = (1.0 - label_smoothing) * nll + label_smoothing * smooth_i

    combined = 0.8 * focal_i + 0.2 * ls_i                       # fused reduction operand

    is_last = pid == pl.num_programs(0) - 1

    # Only the last tile contains padded examples; full tiles sum unmasked.
    @pl.when(is_last)
    def _masked():
        row = jax.lax.broadcasted_iota(jnp.int32, (r_tile, LANES), 0) + pid * r_tile
        lane = jax.lax.broadcasted_iota(jnp.int32, (r_tile, LANES), 1)
        idx = row * LANES + lane
        out_ref[0, 0] = jnp.sum(jnp.where(idx < n_valid, combined, 0.0))

    @pl.when(jnp.logical_not(is_last))
    def _full():
        out_ref[0, 0] = jnp.sum(combined)


def enhanced_loss(logits, labels):
    """logits: (N, 2) float, labels: (N,) int. Returns scalar f32 loss."""
    n, c = logits.shape
    if c != 2:
        raise ValueError("EnhancedLossFunction is binary (class_weights has 2 entries).")

    rows = pl.cdiv(n, LANES)
    r_tile = min(R_TILE_MAX, _round_up(rows, 8))
    rows_padded = _round_up(rows, r_tile)
    n_pad = rows_padded * LANES
    grid_n = rows_padded // r_tile

    # Lane-dense, sublane-dense repack: classes leading, then (rows, 128 lanes).
    # Native dtype is streamed; the kernel casts to f32.
    logits_t = jnp.transpose(jnp.asarray(logits))                       # (2, N)
    logits_t = jnp.pad(logits_t, ((0, 0), (0, n_pad - n)))              # (2, n_pad)
    logits_r = logits_t.reshape(2, rows_padded, LANES)

    labels_p = jnp.pad(jnp.asarray(labels, dtype=jnp.int32), (0, n_pad - n))
    labels_r = labels_p.reshape(rows_padded, LANES)

    kernel = functools.partial(
        _loss_kernel,
        n_valid=n,
        r_tile=r_tile,
        focal_alpha=FOCAL_ALPHA,
        focal_gamma=FOCAL_GAMMA,
        label_smoothing=LABEL_SMOOTHING,
        w0=CLASS_WEIGHTS[0],
        w1=CLASS_WEIGHTS[1],
    )

    logit_bytes = 2 * n_pad * jnp.dtype(logits_r.dtype).itemsize
    cost = pl.CostEstimate(
        flops=25 * n_pad,
        transcendentals=3 * n_pad,                    # exp(-|d|), log, exp(-ce)
        bytes_accessed=logit_bytes + 4 * n_pad + 4 * grid_n,
    )

    partials = pl.pallas_call(
        kernel,
        out_shape=jax.ShapeDtypeStruct((grid_n, 1), jnp.float32),
        grid=(grid_n,),
        in_specs=[
            pl.BlockSpec((2, r_tile, LANES), lambda i: (0, i, 0)),   # logits
            pl.BlockSpec((r_tile, LANES), lambda i: (i, 0)),         # labels
        ],
        out_specs=pl.BlockSpec((1, 1), lambda i: (i, 0),
                               memory_space=pltpu.MemorySpace.SMEM),  # per-tile partial sum
        compiler_params=pltpu.CompilerParams(
            dimension_semantics=("parallel",),        # each step owns its output slot
            vmem_limit_bytes=32 * 1024 * 1024,
        ),
        cost_estimate=cost,
    )(logits_r, labels_r)

    # Single division by the true N at the very end (matches reference rounding).
    return jnp.sum(partials) / jnp.float32(n)


def _reference_loss(logits, labels):
    """Pure-JAX reference matching the PyTorch forward, for validation."""
    logits = logits.astype(jnp.float32)
    w = jnp.asarray(CLASS_WEIGHTS, dtype=jnp.float32)
    log_probs = jax.nn.log_softmax(logits, axis=1)
    nll = -jnp.take_along_axis(log_probs, labels[:, None], axis=1)[:, 0]
    ce = w[labels] * nll
    pt = jnp.exp(-ce)
    focal = jnp.mean(FOCAL_ALPHA * (1.0 - pt) ** FOCAL_GAMMA * ce)
    smooth_i = -jnp.mean(log_probs, axis=1)
    ls = (1.0 - LABEL_SMOOTHING) * nll + LABEL_SMOOTHING * smooth_i
    return 0.8 * focal + 0.2 * jnp.mean(ls)


if __name__ == "__main__":
    key = jax.random.PRNGKey(0)
    k1, k2, k3, k4 = jax.random.split(key, 4)

    # Small case matching the module's binary-classification head.
    N, C = 8, 2
    logits = jax.random.normal(k1, (N, C), dtype=jnp.float32) * 2.0
    labels = jax.random.randint(k2, (N,), 0, C, dtype=jnp.int32)

    loss = enhanced_loss(logits, labels)
    jax.block_until_ready(loss)
    ref = _reference_loss(logits, labels)
    assert jnp.allclose(loss, ref, rtol=1e-5, atol=1e-5), (loss, ref)

    # Larger case exercising tail masking (rows not a multiple of 128).
    N2 = 20000
    logits2 = jax.random.normal(k3, (N2, C), dtype=jnp.float32) * 2.0
    labels2 = jax.random.randint(k4, (N2,), 0, C, dtype=jnp.int32)
    loss2 = enhanced_loss(logits2, labels2)
    jax.block_until_ready(loss2)
    ref2 = _reference_loss(logits2, labels2)
    assert jnp.allclose(loss2, ref2, rtol=1e-4, atol=1e-5), (loss2, ref2)

    print("KERNEL_OK")
</pallas_src>

<mosaic_0001>
module attributes {stable_mosaic.version = 11 : i64} {
  func.func @_loss_kernel(%arg0: i32, %arg1: memref<2x8x128xf32, #tpu.memory_space<vmem>>, %arg2: memref<8x128xi32, #tpu.memory_space<vmem>>, %arg3: memref<1x1xf32, #tpu.memory_space<smem>>) attributes {dimension_semantics = [#tpu.dimension_semantics<parallel>], iteration_bounds = array<i64: 1>, scalar_prefetch = 0 : i64, scratch_operands = 0 : i64, tpu.core_type = #tpu.core_type<tc>, window_params = [{transform_indices = @transform_0, window_bounds = array<i64: 2, 8, 128>}, {transform_indices = @transform_1, window_bounds = array<i64: 8, 128>}, {transform_indices = @transform_2, window_bounds = array<i64: 1, 1>}]} {
    %c0 = arith.constant 0 : index
    %c0_0 = arith.constant 0 : index
    %c0_1 = arith.constant 0 : index
    %0 = vector.load %arg1[%c0, %c0_0, %c0_1] : memref<2x8x128xf32, #tpu.memory_space<vmem>>, vector<1x8x128xf32>
    %1 = vector.shape_cast %0 : vector<1x8x128xf32> to vector<8x128xf32>
    %c1 = arith.constant 1 : index
    %c0_2 = arith.constant 0 : index
    %c0_3 = arith.constant 0 : index
    %2 = vector.load %arg1[%c1, %c0_2, %c0_3] : memref<2x8x128xf32, #tpu.memory_space<vmem>>, vector<1x8x128xf32>
    %3 = vector.shape_cast %2 : vector<1x8x128xf32> to vector<8x128xf32>
    %c0_4 = arith.constant 0 : index
    %c0_5 = arith.constant 0 : index
    %4 = vector.load %arg2[%c0_4, %c0_5] : memref<8x128xi32, #tpu.memory_space<vmem>>, vector<8x128xi32>
    %5 = arith.subf %1, %3 : vector<8x128xf32>
    %6 = math.absf %5 : vector<8x128xf32>
    %7 = arith.maximumf %1, %3 : vector<8x128xf32>
    %cst = arith.constant 0.000000e+00 : f32
    %8 = vector.broadcast %cst : f32 to vector<8x128xf32>
    %9 = arith.subf %8, %6 : vector<8x128xf32>
    %10 = math.exp %9 : vector<8x128xf32>
    %cst_6 = arith.constant 1.000000e+00 : f32
    %11 = vector.broadcast %cst_6 : f32 to vector<8x128xf32>
    %12 = arith.addf %11, %10 : vector<8x128xf32>
    %13 = math.log %12 : vector<8x128xf32>
    %14 = arith.addf %7, %13 : vector<8x128xf32>
    %c1_i32 = arith.constant 1 : i32
    %15 = vector.broadcast %c1_i32 : i32 to vector<8x128xi32>
    %16 = arith.cmpi eq, %4, %15 : vector<8x128xi32>
    %17 = arith.select %16, %3, %1 : vector<8x128xi1>, vector<8x128xf32>
    %cst_7 = arith.constant 2.850000e+00 : f32
    %cst_8 = arith.constant 3.500000e-01 : f32
    %18 = vector.broadcast %cst_7 : f32 to vector<8x128xf32>
    %19 = vector.broadcast %cst_8 : f32 to vector<8x128xf32>
    %20 = arith.select %16, %18, %19 : vector<8x128xi1>, vector<8x128xf32>
    %21 = arith.subf %14, %17 : vector<8x128xf32>
    %22 = arith.mulf %20, %21 : vector<8x128xf32>
    %cst_9 = arith.constant 0.000000e+00 : f32
    %23 = vector.broadcast %cst_9 : f32 to vector<8x128xf32>
    %24 = arith.subf %23, %22 : vector<8x128xf32>
    %25 = math.exp %24 : vector<8x128xf32>
    %cst_10 = arith.constant 1.000000e+00 : f32
    %26 = vector.broadcast %cst_10 : f32 to vector<8x128xf32>
    %27 = arith.subf %26, %25 : vector<8x128xf32>
    %28 = arith.mulf %27, %27 : vector<8x128xf32>
    %cst_11 = arith.constant 2.500000e-01 : f32
    %29 = vector.broadcast %cst_11 : f32 to vector<8x128xf32>
    %30 = arith.mulf %29, %28 : vector<8x128xf32>
    %31 = arith.mulf %30, %22 : vector<8x128xf32>
    %32 = arith.addf %1, %3 : vector<8x128xf32>
    %cst_12 = arith.constant 5.000000e-01 : f32
    %33 = vector.broadcast %cst_12 : f32 to vector<8x128xf32>
    %34 = arith.mulf %33, %32 : vector<8x128xf32>
    %35 = arith.subf %14, %34 : vector<8x128xf32>
    %cst_13 = arith.constant 0.899999976 : f32
    %36 = vector.broadcast %cst_13 : f32 to vector<8x128xf32>
    %37 = arith.mulf %36, %21 : vector<8x128xf32>
    %cst_14 = arith.constant 1.000000e-01 : f32
    %38 = vector.broadcast %cst_14 : f32 to vector<8x128xf32>
    %39 = arith.mulf %38, %35 : vector<8x128xf32>
    %40 = arith.addf %37, %39 : vector<8x128xf32>
    %cst_15 = arith.constant 8.000000e-01 : f32
    %41 = vector.broadcast %cst_15 : f32 to vector<8x128xf32>
    %42 = arith.mulf %41, %31 : vector<8x128xf32>
    %cst_16 = arith.constant 2.000000e-01 : f32
    %43 = vector.broadcast %cst_16 : f32 to vector<8x128xf32>
    %44 = arith.mulf %43, %40 : vector<8x128xf32>
    %45 = arith.addf %42, %44 : vector<8x128xf32>
    %c0_i32 = arith.constant 0 : i32
    %46 = arith.cmpi eq, %arg0, %c0_i32 : i32
    %47 = arith.extui %46 : i1 to i32
    %c0_i32_17 = arith.constant 0 : i32
    %48 = arith.cmpi ne, %47, %c0_i32_17 : i32
    scf.if %48 {
      %52 = tpu.iota {dimensions = array<i32: 0>} : vector<8x128xi32>
      %c8_i32 = arith.constant 8 : i32
      %53 = arith.muli %arg0, %c8_i32 : i32
      %54 = vector.broadcast %53 : i32 to vector<8x128xi32>
      %55 = arith.addi %52, %54 : vector<8x128xi32>
      %56 = tpu.iota {dimensions = array<i32: 1>} : vector<8x128xi32>
      %c128_i32 = arith.constant 128 : i32
      %57 = vector.broadcast %c128_i32 : i32 to vector<8x128xi32>
      %58 = arith.muli %55, %57 : vector<8x128xi32>
      %59 = arith.addi %58, %56 : vector<8x128xi32>
      %c8_i32_19 = arith.constant 8 : i32
      %60 = vector.broadcast %c8_i32_19 : i32 to vector<8x128xi32>
      %61 = arith.cmpi slt, %59, %60 : vector<8x128xi32>
      %cst_20 = arith.constant 0.000000e+00 : f32
      %62 = vector.broadcast %cst_20 : f32 to vector<8x128xf32>
      %63 = arith.select %61, %45, %62 : vector<8x128xi1>, vector<8x128xf32>
      %64 = vector.shape_cast %63 : vector<8x128xf32> to vector<1x8x128xf32>
      %cst_21 = arith.constant dense<0.000000e+00> : vector<1xf32>
      %65 = vector.multi_reduction <add>, %64, %cst_21 [1, 2] : vector<1x8x128xf32> to vector<1xf32>
      %66 = vector.shape_cast %65 : vector<1xf32> to vector<1x1x1xf32>
      %67 = vector.extract %66[0, 0, 0] : f32 from vector<1x1x1xf32>
      %c0_22 = arith.constant 0 : index
      %c0_23 = arith.constant 0 : index
      %68 = memref.load %arg3[%c0_22, %c0_23] : memref<1x1xf32, #tpu.memory_space<smem>>
      memref.store %67, %arg3[%c0_22, %c0_23] : memref<1x1xf32, #tpu.memory_space<smem>>
    } else {
    }
    %true = arith.constant true
    %49 = arith.xori %46, %true : i1
    %50 = arith.extui %49 : i1 to i32
    %c0_i32_18 = arith.constant 0 : i32
    %51 = arith.cmpi ne, %50, %c0_i32_18 : i32
    scf.if %51 {
      %52 = vector.shape_cast %45 : vector<8x128xf32> to vector<1x8x128xf32>
      %cst_19 = arith.constant dense<0.000000e+00> : vector<1xf32>
      %53 = vector.multi_reduction <add>, %52, %cst_19 [1, 2] : vector<1x8x128xf32> to vector<1xf32>
      %54 = vector.shape_cast %53 : vector<1xf32> to vector<1x1x1xf32>
      %55 = vector.extract %54[0, 0, 0] : f32 from vector<1x1x1xf32>
      %c0_20 = arith.constant 0 : index
      %c0_21 = arith.constant 0 : index
      %56 = memref.load %arg3[%c0_20, %c0_21] : memref<1x1xf32, #tpu.memory_space<smem>>
      memref.store %55, %arg3[%c0_20, %c0_21] : memref<1x1xf32, #tpu.memory_space<smem>>
    } else {
    }
    return
  }
  func.func @transform_0(%arg0: i32) -> (i32, i32, i32) {
    %c0_i32 = arith.constant 0 : i32
    %c0_i32_0 = arith.constant 0 : i32
    %c0_i32_1 = arith.constant 0 : i32
    return %c0_i32, %arg0, %c0_i32_0 : i32, i32, i32
  }
  func.func @transform_1(%arg0: i32) -> (i32, i32) {
    %c0_i32 = arith.constant 0 : i32
    %c0_i32_0 = arith.constant 0 : i32
    return %arg0, %c0_i32 : i32, i32
  }
  func.func @transform_2(%arg0: i32) -> (i32, i32) {
    %c0_i32 = arith.constant 0 : i32
    %c0_i32_0 = arith.constant 0 : i32
    return %arg0, %c0_i32 : i32, i32
  }
}

</mosaic_0001>

<llo_original>
// kernel: tpu_custom_call.1
$region0: #{tpu_custom_call.1}
  #allocation0 [shape = 'u32[]', space=smem, size = 0x4, offset = 0x4, fixed_abs, tag = 'smem constant byte address 0x4 - core index']
  #allocation1 [shape = 'u32[144,128]{1,0:T(1,128)}', space=vmem, size = 0x12000, scoped, tag = 'internal scratch']
  %s0 = inlined_call_operand.hbm [shape: f32[2,8,128], index: 0, kind: input, shape index: {}]
  %s1 = inlined_call_operand.hbm [shape: s32[8,128], index: 1, kind: input, shape index: {}]
  %s2 = inlined_call_operand.hbm [shape: f32[1,1], index: 2, kind: output, shape index: {}]
  %s3 = sld [smem:[#allocation0]]
  $region34: #{tpu_custom_call.1} parent=0
    _
  %s5 = ssub.s32 1, %s3
  %s6 = scalar_select 0, %s5, %s3
  $region1: #{tpu_custom_call.1} parent=0
    #allocation2 [shape = 'u8[8192]{0}', space=vmem, size = 0x2000, scoped, tag = 'input window, operand 0, single buffered']
    #allocation3 [shape = 's32[1]{0}', space=sflag, size = 0x4, scoped, tag = 'scoped memory for tpu_custom_call.1']
    #allocation4 [shape = 's32[1]{0}', space=sflag, size = 0x4, scoped, tag = 'scoped memory for tpu_custom_call.1']
    #allocation5 [shape = 'u8[4096]{0}', space=vmem, size = 0x1000, scoped, tag = 'input window, operand 1, single buffered']
    #allocation6 [shape = 's32[1]{0}', space=sflag, size = 0x4, scoped, tag = 'scoped memory for tpu_custom_call.1']
    #allocation7 [shape = 'u8[512]{0}', space=smem, size = 0x200, scoped, tag = 'output window, operand 0, single buffered']
    %7 = vsyncpa [#allocation3], 0
    %8 = vsyncpa [#allocation6], 0
    %9 = vsyncpa [#allocation4], 0
    // Predicated region
    $region2: #{tpu_custom_call.1} parent=1 // pred_check
      _
    $region3: #{tpu_custom_call.1} parent=1 // pred_check_branch
      %11 = sbr.rel (0) target = $region5
    $region4: #{tpu_custom_call.1} parent=1 // pred_region
      %s13 = ssub.s32 256, 256
      %14 = vsyncadd [#allocation3], %s13
      %s15 = sshll.u32 [#allocation2], 4
      %s16 = int_to_ptr.vmem [resolvable:$true] %s15
      %21 = dma.hbm_to_vmem [thread:$0]  %s0, 256, %s16, [#allocation3], 128, 128, 8
    $region5: #{tpu_custom_call.1} parent=1 // pred_fallthru
      _
    // Predicated region
    $region6: #{tpu_custom_call.1} parent=1 // pred_check
      _
    $region7: #{tpu_custom_call.1} parent=1 // pred_check_branch
      %23 = sbr.rel (0) target = $region9
    $region8: #{tpu_custom_call.1} parent=1 // pred_region
      %s25 = ssub.s32 128, 128
      %26 = vsyncadd [#allocation6], %s25
      %s28 = sshll.u32 [#allocation5], 4
      %s29 = int_to_ptr.vmem [resolvable:$true] %s28
      %31 = dma.hbm_to_vmem [thread:$0]  %s1, 128, %s29, [#allocation6]
    $region9: #{tpu_custom_call.1} parent=1 // pred_fallthru
      _
    // Predicated region
    $region10: #{tpu_custom_call.1} parent=1 // pred_check
      _
    $region11: #{tpu_custom_call.1} parent=1 // pred_check_branch
      %33 = sbr.rel (0) target = $region13
    $region12: #{tpu_custom_call.1} parent=1 // pred_region
      %34 = dma.done [#allocation3], 256
    $region13: #{tpu_custom_call.1} parent=1 // pred_fallthru
      _
    // Predicated region
    $region14: #{tpu_custom_call.1} parent=1 // pred_check
      _
    $region15: #{tpu_custom_call.1} parent=1 // pred_check_branch
      %36 = sbr.rel (0) target = $region17
    $region16: #{tpu_custom_call.1} parent=1 // pred_region
      %37 = dma.done [#allocation6], 128
    $region17: #{tpu_custom_call.1} parent=1 // pred_fallthru
      _
    %v38 = vld [vmem:[#allocation2] sm:$0xff]
    %s39 = scalar_lea.vmem [#allocation2], 8
    %v40 = vld [vmem:[%s39] sm:$0xff]
    %v41 = vld [vmem:[#allocation5] sm:$0xff]
    %v42 = vsub.f32 %v38, %v40
    %v43 = vand.u32 2147483647, %v42
    %v44 = vmax.f32 %v38, %v40
    %v45 = vsub.f32 0.0, %v43
    %v46 = vmul.f32 %v45, 1.442695
    %v47 = vpow.pop %v46
    %v48 = vadd.f32 %v47, 1.0
    %v49 = vlog2.pop %v48
    %v50 = vmul.f32 %v49, 0.6931472
    %v51 = vadd.f32 %v44, %v50
    %vm52 = vcmp.eq.s32.totalorder %v41, 1
    %v53 = vsel %vm52, %v40, %v38
    %v54 = vsel %vm52, 2.85, 0.35
    %v55 = vsub.f32 %v51, %v53
    %v56 = vmul.f32 %v54, %v55
    %v57 = vsub.f32 0.0, %v56
    %v58 = vmul.f32 %v57, 1.442695
    %v59 = vpow.pop %v58
    %v60 = vsub.f32 1.0, %v59
    %v61 = vmul.f32 %v60, %v60
    %v62 = vmul.f32 %v61, 0.25
    %v63 = vmul.f32 %v62, %v56
    %v64 = vadd.f32 %v38, %v40
    %v65 = vmul.f32 %v64, 0.5
    %v66 = vsub.f32 %v51, %v65
    %v67 = vmul.f32 %v55, 0.9
    %v68 = vmul.f32 %v66, 0.1
    %v69 = vadd.f32 %v67, %v68
    %v70 = vmul.f32 %v63, 0.8
    %v71 = vmul.f32 %v69, 0.2
    %v72 = vadd.f32 %v70, %v71
    %p73 = scmp.eq.s32.totalorder 0, 0
    // Predicated region
    $region18: #{tpu_custom_call.1} parent=1 // pred_check
      %p74 = pneg %p73
    $region19: #{tpu_custom_call.1} parent=1 // pred_check_branch
      %76 = sbr.rel (%p74) target = $region21
    $region20: #{tpu_custom_call.1} parent=1 // pred_region
      %v77 = vlaneseq
      %v78 = vshrl.u32 %v77, 7
      %s79 = smul.u32 0, 8
      %v80 = vstv %s79
      %v81 = vadd.s32 %v78, %v80
      %v82 = vlaneseq
      %v83 = vand.u32 %v82, 127
      %v84 = vmul.u32 %v81, 128
      %v85 = vadd.s32 %v84, %v83
      %vm86 = vcmp.lt.s32.totalorder %v85, 8
      %v87 = vsel %vm86, %v72, 0.0
      %88 = vadd.xlane.f32.xlu0 %v87
      %v89 = vpop.xlane.xlu0 %88
      %v90 = vrot.slane %v89, 4
      %v91 = vadd.f32 %v89, %v90
      %v92 = vrot.slane %v91, 2
      %v93 = vadd.f32 %v91, %v92
      %v94 = vrot.slane %v93, 1
      %v95 = vadd.f32 %v93, %v94
      %s96 = vtos %v95
      %s97 = scalar_lea.smem [#allocation7], 0
      %98 = sst [smem:[%s97]] %s96
    $region21: #{tpu_custom_call.1} parent=1 // pred_fallthru
      _
    %p99 = scmp.ne.s32.totalorder 0, 0
    // Predicated region
    $region22: #{tpu_custom_call.1} parent=1 // pred_check
      %p100 = pneg %p99
    $region23: #{tpu_custom_call.1} parent=1 // pred_check_branch
      %102 = sbr.rel (%p100) target = $region25
    $region24: #{tpu_custom_call.1} parent=1 // pred_region
      %103 = vadd.xlane.f32.xlu0 %v72
      %v104 = vpop.xlane.xlu0 %103
      %v105 = vrot.slane %v104, 4
      %v106 = vadd.f32 %v104, %v105
      %v107 = vrot.slane %v106, 2
      %v108 = vadd.f32 %v106, %v107
      %v109 = vrot.slane %v108, 1
      %v110 = vadd.f32 %v108, %v109
      %s111 = vtos %v110
      %s112 = scalar_lea.smem [#allocation7], 0
      %113 = sst [smem:[%s112]] %s111
    $region25: #{tpu_custom_call.1} parent=1 // pred_fallthru
      _
    // Predicated region
    $region26: #{tpu_custom_call.1} parent=1 // pred_check
      _
    $region27: #{tpu_custom_call.1} parent=1 // pred_check_branch
      %115 = sbr.rel (0) target = $region29
    $region28: #{tpu_custom_call.1} parent=1 // pred_region
      %s117 = ssub.s32 16, 16
      %118 = vsyncadd [#allocation4], %s117
      %121 = dma.smem_to_hbm [#allocation7], 16, %s2, [#allocation4]
    $region29: #{tpu_custom_call.1} parent=1 // pred_fallthru
      _
    // Predicated region
    $region30: #{tpu_custom_call.1} parent=1 // pred_check
      _
    $region31: #{tpu_custom_call.1} parent=1 // pred_check_branch
      %123 = sbr.rel (0) target = $region33
    $region32: #{tpu_custom_call.1} parent=1 // pred_region
      %124 = dma.done [#allocation4], 16
    $region33: #{tpu_custom_call.1} parent=1 // pred_fallthru
      _
    %125 = sfence
    %126 = vsyncpa [#allocation3], 1
    %127 = vsyncpa [#allocation6], 1
    %128 = vsyncpa [#allocation4], 1

</llo_original>
